<compile_context>
chip_gen: v6e
topology: v6e:2x2x1
jax: 0.10.0
libtpu: 0.0.40
codegen_flags: <defaults>
</compile_context>

<pallas_src>
import jax
import jax.numpy as jnp
import numpy as np
from jax.experimental import pallas as pl
from jax.experimental.pallas import tpu as pltpu

_LANE = 128
_SUBLANE = 8

_DEFAULT_VMEM_BUDGET = 24 * 1024 * 1024   # sizing target: blocks + temporaries
_VMEM_LIMIT_BYTES = 48 * 1024 * 1024      # explicit scoped-VMEM allowance


def _round_up(v, m):
    return (v + m - 1) // m * m


def _choose_tile_rows(num_rows, cin, seg_channels, use_rel, budget_bytes):
    """Rows of 128 lanes processed per grid step.

    Accounts for double-buffered input/output blocks plus ~4 slab-sized
    in-kernel temporaries so v5e's 16 MiB default scoped VMEM is never
    silently exceeded, while still being big enough that per-step HBM time
    dominates per-step grid overhead on v7x.
    """
    bytes_per_row = _LANE * 4 * (2 * cin + 2 * seg_channels
                                 + (2 if use_rel else 0) + 4)
    tr = int(budget_bytes) // bytes_per_row
    if tr >= num_rows:
        return num_rows               # single block covers the whole HW axis
    return max(_SUBLANE, (tr // _SUBLANE) * _SUBLANE)


def _make_head_kernel(cin, n_classes, n_zero_ch, tile_rows, n_t, hw,
                      use_rel, emit_seg, emit_cover, needs_mask,
                      x_cast, rel_cast):
    def kernel(*refs):
        i = 0
        w_ref = refs[i]; i += 1            # SMEM (n_classes*cin,) f32
        b_ref = refs[i]; i += 1            # SMEM (n_classes,)     f32
        x_ref = refs[i]; i += 1            # VMEM (cin, TR, 128)
        rel_ref = None
        if use_rel:
            rel_ref = refs[i]; i += 1      # VMEM (1, TR, 128)
        seg_ref = cover_ref = relsum_ref = None
        if emit_seg:
            seg_ref = refs[i]; i += 1      # VMEM (c_total, TR, 128)
        cov_scr = rel_scr = None
        if emit_cover:
            cover_ref = refs[i]; i += 1    # VMEM (n_classes, 1)
            if use_rel:
                relsum_ref = refs[i]; i += 1   # VMEM (1, 1)
            cov_scr = refs[i]; i += 1      # VMEM scratch (n_classes, 128)
            if use_rel:
                rel_scr = refs[i]; i += 1  # VMEM scratch (1, 128)

        t = pl.program_id(1)

        rel = None
        if use_rel:
            rel = rel_ref[0]
            if rel_cast:
                rel = rel.astype(jnp.float32)

        def load_x(k):
            xk = x_ref[k]
            return xk.astype(jnp.float32) if x_cast else xk

        xs = [load_x(k) for k in range(cin)]   # dense (TR, 128) slabs

        def class_slab(c):
            # 1x1-conv head for one class: SMEM scalar weights splat against
            # full vregs (VPU FMAs), sigmoid on the EUP.  No sublane-sparse
            # (Cout, T) intermediates.
            acc = b_ref[c] + w_ref[c * cin] * xs[0]
            for k in range(1, cin):
                acc = acc + w_ref[c * cin + k] * xs[k]
            s = jax.nn.sigmoid(acc)
            if use_rel:
                s = s * rel
            return s

        if emit_seg:
            zeros = jnp.zeros((tile_rows, _LANE), jnp.float32)
            for c in range(n_classes):
                seg_ref[c] = class_slab(c)
            for j in range(n_zero_ch):         # dead litter / zero background
                seg_ref[n_classes + j] = zeros
            # irrelevance channel written directly by the kernel
            seg_ref[n_classes + n_zero_ch] = (1.0 - rel) if use_rel else zeros

        if emit_cover:
            @pl.when(t == 0)
            def _():
                cov_scr[...] = jnp.zeros((n_classes, _LANE), jnp.float32)
                if use_rel:
                    rel_scr[...] = jnp.zeros((1, _LANE), jnp.float32)

            def accumulate(mask):
                # Stage 1: per-lane partial sums (VPU adds + sublane reduce).
                for c in range(n_classes):
                    s = class_slab(c)
                    if mask is not None:
                        # jnp.where (NOT multiply): OOB lanes of the last
                        # block may hold NaN/Inf garbage.
                        s = jnp.where(mask, s, 0.0)
                    cov_scr[c:c + 1, :] = (
                        cov_scr[c:c + 1, :]
                        + jnp.sum(s, axis=0, keepdims=True))
                if use_rel:
                    r = rel
                    if mask is not None:
                        r = jnp.where(mask, r, 0.0)
                    rel_scr[...] = rel_scr[...] + jnp.sum(
                        r, axis=0, keepdims=True)

            if needs_mask:
                # Tail-mask work (iota/compare/select) only on the final tile.
                @pl.when(t != n_t - 1)
                def _():
                    accumulate(None)

                @pl.when(t == n_t - 1)
                def _():
                    row = t * tile_rows + jax.lax.broadcasted_iota(
                        jnp.int32, (tile_rows, _LANE), 0)
                    lane = jax.lax.broadcasted_iota(
                        jnp.int32, (tile_rows, _LANE), 1)
                    accumulate(row * _LANE + lane < hw)
            else:
                accumulate(None)

            @pl.when(t == n_t - 1)
            def _():
                # Stage 2: single cross-lane reduce per image.
                cover_ref[...] = jnp.sum(cov_scr[...], axis=1, keepdims=True)
                if use_rel:
                    relsum_ref[...] = jnp.sum(rel_scr[...], axis=1,
                                              keepdims=True)

    return kernel


def _run_head(x4, w_flat, b_flat, rel4, *, n_classes, n_zero_ch, hw,
              emit_seg, emit_cover, vmem_budget_bytes=_DEFAULT_VMEM_BUDGET):
    B, cin, num_rows, lane = x4.shape
    assert lane == _LANE
    use_rel = rel4 is not None
    c_total = n_classes + n_zero_ch + 1 if emit_seg else n_classes

    tr = _choose_tile_rows(num_rows, cin, c_total if emit_seg else 0,
                           use_rel, vmem_budget_bytes)
    n_t = pl.cdiv(num_rows, tr)
    # Mask only needed for cover sums, and only when the final grid block
    # runs past the true H*W extent (partial 128-lane row and/or OOB rows).
    needs_mask = emit_cover and (n_t * tr * _LANE != hw)

    x_cast = x4.dtype != jnp.float32
    rel_cast = use_rel and rel4.dtype != jnp.float32

    in_specs = [
        pl.BlockSpec(memory_space=pltpu.MemorySpace.SMEM),   # weights (flat)
        pl.BlockSpec(memory_space=pltpu.MemorySpace.SMEM),   # bias
        pl.BlockSpec((pl.Squeezed(), cin, tr, _LANE),
                     lambda b, t: (b, 0, t, 0)),
    ]
    inputs = [w_flat, b_flat, x4]
    if use_rel:
        in_specs.append(pl.BlockSpec((pl.Squeezed(), 1, tr, _LANE),
                                     lambda b, t: (b, 0, t, 0)))
        inputs.append(rel4)

    out_shapes, out_specs, scratch = [], [], []
    if emit_seg:
        out_shapes.append(jax.ShapeDtypeStruct((B, c_total, num_rows, _LANE),
                                               jnp.float32))
        out_specs.append(pl.BlockSpec((pl.Squeezed(), c_total, tr, _LANE),
                                      lambda b, t: (b, 0, t, 0)))
    if emit_cover:
        out_shapes.append(jax.ShapeDtypeStruct((B, n_classes, 1), jnp.float32))
        out_specs.append(pl.BlockSpec((pl.Squeezed(), n_classes, 1),
                                      lambda b, t: (b, 0, 0)))
        if use_rel:
            out_shapes.append(jax.ShapeDtypeStruct((B, 1, 1), jnp.float32))
            out_specs.append(pl.BlockSpec((pl.Squeezed(), 1, 1),
                                          lambda b, t: (b, 0, 0)))
        scratch.append(pltpu.VMEM((n_classes, _LANE), jnp.float32))
        if use_rel:
            scratch.append(pltpu.VMEM((1, _LANE), jnp.float32))

    kernel = _make_head_kernel(cin, n_classes, n_zero_ch, tr, n_t, hw,
                               use_rel, emit_seg, emit_cover, needs_mask,
                               x_cast, rel_cast)

    # HW axis carries the resident cover accumulator -> "arbitrary";
    # in pure segmentation mode every block is independent -> fully parallel.
    dim_sem = (("parallel", "arbitrary") if emit_cover
               else ("parallel", "parallel"))

    outs = pl.pallas_call(
        kernel,
        out_shape=tuple(out_shapes),
        grid_spec=pltpu.PrefetchScalarGridSpec(
            num_scalar_prefetch=0,
            grid=(B, n_t),
            in_specs=in_specs,
            out_specs=out_specs,
            scratch_shapes=scratch,
        ),
        compiler_params=pltpu.CompilerParams(
            dimension_semantics=dim_sem,
            vmem_limit_bytes=_VMEM_LIMIT_BYTES),
    )(*inputs)

    res, i = {}, 0
    if emit_seg:
        res["seg"] = outs[i]; i += 1
    if emit_cover:
        res["cover"] = outs[i]; i += 1
        if use_rel:
            res["relsum"] = outs[i]; i += 1
    return res


def segmentation_based_cover_prediction(
    x_nchw,                 # (B, Cin, H, W)
    weight,                 # (Cout, Cin)  1x1-conv segmentation-head weight
    bias,                   # (Cout,)
    relevance_nchw=None,    # (B, 1, H, W) relevance map, or None (= "none")
    mode="cover_prediction",
    include_dead_litter=False,
    vmem_budget_bytes=_DEFAULT_VMEM_BUDGET,
):
    B, Cin, H, W = x_nchw.shape
    Cout = weight.shape[0]
    assert weight.shape == (Cout, Cin)
    HW = H * W
    use_rel = relevance_nchw is not None

    # (B, Cin, H, W) -> (B, Cin, HW/128, 128): free reshape when HW % 128 == 0.
    hw_pad = _round_up(HW, _LANE)
    x_flat = x_nchw.reshape(B, Cin, HW)
    rel_flat = relevance_nchw.reshape(B, 1, HW) if use_rel else None
    if hw_pad != HW:
        # TODO(synk): only hit when H*W is not a multiple of 128; costs one
        #             extra XLA pad pass (tail correctness is still handled
        #             by the in-kernel mask / Pallas OOB-write masking).
        x_flat = jnp.pad(x_flat, ((0, 0), (0, 0), (0, hw_pad - HW)))
        if use_rel:
            rel_flat = jnp.pad(rel_flat, ((0, 0), (0, 0), (0, hw_pad - HW)))
    num_rows = hw_pad // _LANE
    x4 = x_flat.reshape(B, Cin, num_rows, _LANE)
    rel4 = rel_flat.reshape(B, 1, num_rows, _LANE) if use_rel else None

    # Weights flattened to 1D so they live in SMEM without 2D padding.
    w_flat = weight.reshape(-1).astype(jnp.float32)
    b_flat = bias.reshape(-1).astype(jnp.float32)

    if mode == "cover_prediction":
        res = _run_head(x4, w_flat, b_flat, rel4, n_classes=Cout, n_zero_ch=0,
                        hw=HW, emit_seg=False, emit_cover=True,
                        vmem_budget_bytes=vmem_budget_bytes)
        class_sums = res["cover"][:, :, 0]                        # (B, Cout)
        if include_dead_litter:
            class_sums = jnp.concatenate(
                [class_sums, jnp.zeros((B, 1), class_sums.dtype)], axis=1)
        if use_rel:
            # Matches the reference: torch.sum(relevance) over the WHOLE batch.
            rel_sum = jnp.sum(res["relsum"])
        else:
            rel_sum = jnp.float32(B * HW)
        cover_values = class_sums / rel_sum
        return jnp.nan_to_num(cover_values, nan=0.0, posinf=0.0, neginf=0.0)

    elif mode == "segmentation":
        # classes + (optional dead litter) + zero background + irrelevance,
        # all written directly by the kernel (no wrapper concatenate pass).
        n_zero = (1 if include_dead_litter else 0) + 1
        res = _run_head(x4, w_flat, b_flat, rel4, n_classes=Cout,
                        n_zero_ch=n_zero, hw=HW, emit_seg=True,
                        emit_cover=False, vmem_budget_bytes=vmem_budget_bytes)
        c_total = Cout + n_zero + 1
        seg = res["seg"].reshape(B, c_total, hw_pad)
        if hw_pad != HW:
            seg = seg[:, :, :HW]
        return seg.reshape(B, c_total, H, W)

    raise ValueError("Invalid mode: " + str(mode))


def _reference_seg(x, weight, bias):
    # Exact-f32 elementwise reference (no matmul-precision ambiguity).
    cam = (jnp.sum(weight[None, :, :, None, None] * x[:, None], axis=2)
           + bias[None, :, None, None])
    return jax.nn.sigmoid(cam)


if __name__ == "__main__":
    B, Cin, H, W = 2, 4, 16, 16
    Cout = 3  # number of synthetic segmentation classes

    key = jax.random.PRNGKey(0)
    kx, kw, kb, kr = jax.random.split(key, 4)
    x = jax.random.normal(kx, (B, Cin, H, W), dtype=jnp.float32)
    weight = 0.1 * jax.random.normal(kw, (Cout, Cin), dtype=jnp.float32)
    bias = 0.1 * jax.random.normal(kb, (Cout,), dtype=jnp.float32)
    relevance = jax.nn.sigmoid(
        jax.random.normal(kr, (B, 1, H, W), dtype=jnp.float32))

    seg_ref = _reference_seg(x, weight, bias)                    # (B,Cout,H,W)

    # --- cover_prediction, relevance_model="none" -------------------------
    cover = jax.block_until_ready(segmentation_based_cover_prediction(
        x, weight, bias, relevance_nchw=None, mode="cover_prediction"))
    assert cover.shape == (B, Cout), cover.shape
    cover_ref = jnp.sum(seg_ref, axis=(2, 3)) / float(B * H * W)
    np.testing.assert_allclose(np.asarray(cover), np.asarray(cover_ref),
                               rtol=1e-5, atol=1e-5)

    # --- cover_prediction with an explicit relevance map ------------------
    cover_r = jax.block_until_ready(segmentation_based_cover_prediction(
        x, weight, bias, relevance_nchw=relevance, mode="cover_prediction"))
    cover_r_ref = (jnp.sum(seg_ref * relevance, axis=(2, 3))
                   / jnp.sum(relevance))
    np.testing.assert_allclose(np.asarray(cover_r), np.asarray(cover_r_ref),
                               rtol=1e-5, atol=1e-5)

    # --- cover_prediction with dead-litter channel ------------------------
    cover_dl = jax.block_until_ready(segmentation_based_cover_prediction(
        x, weight, bias, relevance_nchw=None, mode="cover_prediction",
        include_dead_litter=True))
    assert cover_dl.shape == (B, Cout + 1), cover_dl.shape
    np.testing.assert_allclose(np.asarray(cover_dl[:, -1]),
                               np.zeros((B,), np.float32), atol=0)

    # --- segmentation mode, no relevance -----------------------------------
    seg_none = jax.block_until_ready(segmentation_based_cover_prediction(
        x, weight, bias, relevance_nchw=None, mode="segmentation"))
    assert seg_none.shape == (B, Cout + 2, H, W), seg_none.shape
    np.testing.assert_allclose(np.asarray(seg_none[:, :Cout]),
                               np.asarray(seg_ref), rtol=1e-5, atol=1e-5)
    np.testing.assert_allclose(np.asarray(seg_none[:, Cout:]),
                               np.zeros((B, 2, H, W), np.float32), atol=0)

    # --- segmentation mode with relevance (kernel-written irrelevance) -----
    seg_r = jax.block_until_ready(segmentation_based_cover_prediction(
        x, weight, bias, relevance_nchw=relevance, mode="segmentation"))
    np.testing.assert_allclose(np.asarray(seg_r[:, :Cout]),
                               np.asarray(seg_ref * relevance),
                               rtol=1e-5, atol=1e-5)
    np.testing.assert_allclose(np.asarray(seg_r[:, Cout]),
                               np.zeros((B, H, W), np.float32), atol=0)
    np.testing.assert_allclose(np.asarray(seg_r[:, Cout + 1]),
                               np.asarray(1.0 - relevance[:, 0]),
                               rtol=1e-5, atol=1e-5)

    # --- non-multiple-of-128 spatial extent (tail-mask path) ---------------
    Ho, Wo = 12, 10                                     # H*W = 120 < 128
    xo = jax.random.normal(jax.random.PRNGKey(1), (B, Cin, Ho, Wo),
                           dtype=jnp.float32)
    cover_o = jax.block_until_ready(segmentation_based_cover_prediction(
        xo, weight, bias, relevance_nchw=None, mode="cover_prediction"))
    seg_o_ref = _reference_seg(xo, weight, bias)
    cover_o_ref = jnp.sum(seg_o_ref, axis=(2, 3)) / float(B * Ho * Wo)
    np.testing.assert_allclose(np.asarray(cover_o), np.asarray(cover_o_ref),
                               rtol=1e-5, atol=1e-5)

    # --- multi-tile HW axis with a partial last block (tiny VMEM budget) ---
    Hm, Wm = 48, 48                                     # R = 18 rows of 128
    xm = jax.random.normal(jax.random.PRNGKey(2), (B, Cin, Hm, Wm),
                           dtype=jnp.float32)
    relm = jax.nn.sigmoid(jax.random.normal(
        jax.random.PRNGKey(3), (B, 1, Hm, Wm), dtype=jnp.float32))
    seg_m_ref = _reference_seg(xm, weight, bias)
    cover_m = jax.block_until_ready(segmentation_based_cover_prediction(
        xm, weight, bias, relevance_nchw=relm, mode="cover_prediction",
        vmem_budget_bytes=64 * 1024))
    cover_m_ref = jnp.sum(seg_m_ref * relm, axis=(2, 3)) / jnp.sum(relm)
    np.testing.assert_allclose(np.asarray(cover_m), np.asarray(cover_m_ref),
                               rtol=1e-5, atol=1e-5)

    seg_m = jax.block_until_ready(segmentation_based_cover_prediction(
        xm, weight, bias, relevance_nchw=None, mode="segmentation",
        vmem_budget_bytes=64 * 1024))
    np.testing.assert_allclose(np.asarray(seg_m[:, :Cout]),
                               np.asarray(seg_m_ref), rtol=1e-5, atol=1e-5)

    print("KERNEL_OK")
</pallas_src>

<mosaic_0001>
module attributes {stable_mosaic.version = 11 : i64} {
  func.func @kernel(%arg0: i32, %arg1: i32, %arg2: memref<12xf32, #tpu.memory_space<smem>>, %arg3: memref<3xf32, #tpu.memory_space<smem>>, %arg4: memref<1x4x2x128xf32, #tpu.memory_space<vmem>>, %arg5: memref<1x3x1xf32, #tpu.memory_space<vmem>>, %arg6: memref<3x128xf32, #tpu.memory_space<vmem>>) attributes {dimension_semantics = [#tpu.dimension_semantics<parallel>, #tpu.dimension_semantics<arbitrary>], iteration_bounds = array<i64: 2, 1>, scalar_prefetch = 0 : i64, scratch_operands = 1 : i64, tpu.core_type = #tpu.core_type<tc>, window_params = [{transform_indices = @transform_0, window_bounds = array<i64: 12>}, {transform_indices = @transform_1, window_bounds = array<i64: 3>}, {transform_indices = @transform_2, window_bounds = array<i64: 1, 4, 2, 128>}, {transform_indices = @transform_3, window_bounds = array<i64: 1, 3, 1>}]} {
    %c0 = arith.constant 0 : index
    %c0_0 = arith.constant 0 : index
    %c0_1 = arith.constant 0 : index
    %c0_2 = arith.constant 0 : index
    %0 = vector.load %arg4[%c0, %c0_0, %c0_1, %c0_2] : memref<1x4x2x128xf32, #tpu.memory_space<vmem>>, vector<1x1x2x128xf32>
    %1 = vector.shape_cast %0 : vector<1x1x2x128xf32> to vector<2x128xf32>
    %c0_3 = arith.constant 0 : index
    %c1 = arith.constant 1 : index
    %c0_4 = arith.constant 0 : index
    %c0_5 = arith.constant 0 : index
    %2 = vector.load %arg4[%c0_3, %c1, %c0_4, %c0_5] : memref<1x4x2x128xf32, #tpu.memory_space<vmem>>, vector<1x1x2x128xf32>
    %3 = vector.shape_cast %2 : vector<1x1x2x128xf32> to vector<2x128xf32>
    %c0_6 = arith.constant 0 : index
    %c2 = arith.constant 2 : index
    %c0_7 = arith.constant 0 : index
    %c0_8 = arith.constant 0 : index
    %4 = vector.load %arg4[%c0_6, %c2, %c0_7, %c0_8] : memref<1x4x2x128xf32, #tpu.memory_space<vmem>>, vector<1x1x2x128xf32>
    %5 = vector.shape_cast %4 : vector<1x1x2x128xf32> to vector<2x128xf32>
    %c0_9 = arith.constant 0 : index
    %c3 = arith.constant 3 : index
    %c0_10 = arith.constant 0 : index
    %c0_11 = arith.constant 0 : index
    %6 = vector.load %arg4[%c0_9, %c3, %c0_10, %c0_11] : memref<1x4x2x128xf32, #tpu.memory_space<vmem>>, vector<1x1x2x128xf32>
    %7 = vector.shape_cast %6 : vector<1x1x2x128xf32> to vector<2x128xf32>
    %c0_i32 = arith.constant 0 : i32
    %8 = arith.cmpi eq, %arg1, %c0_i32 : i32
    %9 = arith.extui %8 : i1 to i32
    %c0_i32_12 = arith.constant 0 : i32
    %10 = arith.cmpi ne, %9, %c0_i32_12 : i32
    scf.if %10 {
      %cst_39 = arith.constant 0.000000e+00 : f32
      %98 = vector.broadcast %cst_39 : f32 to vector<3x128xf32>
      %c0_40 = arith.constant 0 : index
      %c0_41 = arith.constant 0 : index
      %99 = vector.load %arg6[%c0_40, %c0_41] : memref<3x128xf32, #tpu.memory_space<vmem>>, vector<3x128xf32>
      tpu.vector_store %arg6[%c0_40, %c0_41], %98 {strides = array<i32>} : memref<3x128xf32, #tpu.memory_space<vmem>>, vector<3x128xf32>,
    } else {
    }
    %c0_13 = arith.constant 0 : index
    %11 = memref.load %arg3[%c0_13] : memref<3xf32, #tpu.memory_space<smem>>
    %c0_14 = arith.constant 0 : index
    %12 = memref.load %arg2[%c0_14] : memref<12xf32, #tpu.memory_space<smem>>
    %13 = vector.broadcast %12 : f32 to vector<2x128xf32>
    %14 = arith.mulf %13, %1 : vector<2x128xf32>
    %15 = vector.broadcast %11 : f32 to vector<2x128xf32>
    %16 = arith.addf %15, %14 : vector<2x128xf32>
    %c1_15 = arith.constant 1 : index
    %17 = memref.load %arg2[%c1_15] : memref<12xf32, #tpu.memory_space<smem>>
    %18 = vector.broadcast %17 : f32 to vector<2x128xf32>
    %19 = arith.mulf %18, %3 : vector<2x128xf32>
    %20 = arith.addf %16, %19 : vector<2x128xf32>
    %c2_16 = arith.constant 2 : index
    %21 = memref.load %arg2[%c2_16] : memref<12xf32, #tpu.memory_space<smem>>
    %22 = vector.broadcast %21 : f32 to vector<2x128xf32>
    %23 = arith.mulf %22, %5 : vector<2x128xf32>
    %24 = arith.addf %20, %23 : vector<2x128xf32>
    %c3_17 = arith.constant 3 : index
    %25 = memref.load %arg2[%c3_17] : memref<12xf32, #tpu.memory_space<smem>>
    %26 = vector.broadcast %25 : f32 to vector<2x128xf32>
    %27 = arith.mulf %26, %7 : vector<2x128xf32>
    %28 = arith.addf %24, %27 : vector<2x128xf32>
    %29 = arith.negf %28 : vector<2x128xf32>
    %30 = math.exp %29 : vector<2x128xf32>
    %cst = arith.constant 1.000000e+00 : f32
    %31 = vector.broadcast %cst : f32 to vector<2x128xf32>
    %32 = arith.addf %31, %30 : vector<2x128xf32>
    %33 = arith.divf %31, %32 : vector<2x128xf32>
    %c0_18 = arith.constant 0 : index
    %c0_19 = arith.constant 0 : index
    %34 = vector.load %arg6[%c0_18, %c0_19] : memref<3x128xf32, #tpu.memory_space<vmem>>, vector<1x128xf32>
    %cst_20 = arith.constant dense<0.000000e+00> : vector<128xf32>
    %35 = vector.multi_reduction <add>, %33, %cst_20 [0] : vector<2x128xf32> to vector<128xf32>
    %36 = vector.shape_cast %35 : vector<128xf32> to vector<1x128xf32>
    %37 = arith.addf %34, %36 : vector<1x128xf32>
    %c0_21 = arith.constant 0 : index
    %c0_22 = arith.constant 0 : index
    %38 = vector.load %arg6[%c0_21, %c0_22] : memref<3x128xf32, #tpu.memory_space<vmem>>, vector<1x128xf32>
    tpu.vector_store %arg6[%c0_21, %c0_22], %37 {strides = array<i32>} : memref<3x128xf32, #tpu.memory_space<vmem>>, vector<1x128xf32>,
    %c1_23 = arith.constant 1 : index
    %39 = memref.load %arg3[%c1_23] : memref<3xf32, #tpu.memory_space<smem>>
    %c4 = arith.constant 4 : index
    %40 = memref.load %arg2[%c4] : memref<12xf32, #tpu.memory_space<smem>>
    %41 = vector.broadcast %40 : f32 to vector<2x128xf32>
    %42 = arith.mulf %41, %1 : vector<2x128xf32>
    %43 = vector.broadcast %39 : f32 to vector<2x128xf32>
    %44 = arith.addf %43, %42 : vector<2x128xf32>
    %c5 = arith.constant 5 : index
    %45 = memref.load %arg2[%c5] : memref<12xf32, #tpu.memory_space<smem>>
    %46 = vector.broadcast %45 : f32 to vector<2x128xf32>
    %47 = arith.mulf %46, %3 : vector<2x128xf32>
    %48 = arith.addf %44, %47 : vector<2x128xf32>
    %c6 = arith.constant 6 : index
    %49 = memref.load %arg2[%c6] : memref<12xf32, #tpu.memory_space<smem>>
    %50 = vector.broadcast %49 : f32 to vector<2x128xf32>
    %51 = arith.mulf %50, %5 : vector<2x128xf32>
    %52 = arith.addf %48, %51 : vector<2x128xf32>
    %c7 = arith.constant 7 : index
    %53 = memref.load %arg2[%c7] : memref<12xf32, #tpu.memory_space<smem>>
    %54 = vector.broadcast %53 : f32 to vector<2x128xf32>
    %55 = arith.mulf %54, %7 : vector<2x128xf32>
    %56 = arith.addf %52, %55 : vector<2x128xf32>
    %57 = arith.negf %56 : vector<2x128xf32>
    %58 = math.exp %57 : vector<2x128xf32>
    %cst_24 = arith.constant 1.000000e+00 : f32
    %59 = vector.broadcast %cst_24 : f32 to vector<2x128xf32>
    %60 = arith.addf %59, %58 : vector<2x128xf32>
    %61 = arith.divf %59, %60 : vector<2x128xf32>
    %c1_25 = arith.constant 1 : index
    %c0_26 = arith.constant 0 : index
    %62 = vector.load %arg6[%c1_25, %c0_26] : memref<3x128xf32, #tpu.memory_space<vmem>>, vector<1x128xf32>
    %cst_27 = arith.constant dense<0.000000e+00> : vector<128xf32>
    %63 = vector.multi_reduction <add>, %61, %cst_27 [0] : vector<2x128xf32> to vector<128xf32>
    %64 = vector.shape_cast %63 : vector<128xf32> to vector<1x128xf32>
    %65 = arith.addf %62, %64 : vector<1x128xf32>
    %c1_28 = arith.constant 1 : index
    %c0_29 = arith.constant 0 : index
    %66 = vector.load %arg6[%c1_28, %c0_29] : memref<3x128xf32, #tpu.memory_space<vmem>>, vector<1x128xf32>
    tpu.vector_store %arg6[%c1_28, %c0_29], %65 {strides = array<i32>} : memref<3x128xf32, #tpu.memory_space<vmem>>, vector<1x128xf32>,
    %c2_30 = arith.constant 2 : index
    %67 = memref.load %arg3[%c2_30] : memref<3xf32, #tpu.memory_space<smem>>
    %c8 = arith.constant 8 : index
    %68 = memref.load %arg2[%c8] : memref<12xf32, #tpu.memory_space<smem>>
    %69 = vector.broadcast %68 : f32 to vector<2x128xf32>
    %70 = arith.mulf %69, %1 : vector<2x128xf32>
    %71 = vector.broadcast %67 : f32 to vector<2x128xf32>
    %72 = arith.addf %71, %70 : vector<2x128xf32>
    %c9 = arith.constant 9 : index
    %73 = memref.load %arg2[%c9] : memref<12xf32, #tpu.memory_space<smem>>
    %74 = vector.broadcast %73 : f32 to vector<2x128xf32>
    %75 = arith.mulf %74, %3 : vector<2x128xf32>
    %76 = arith.addf %72, %75 : vector<2x128xf32>
    %c10 = arith.constant 10 : index
    %77 = memref.load %arg2[%c10] : memref<12xf32, #tpu.memory_space<smem>>
    %78 = vector.broadcast %77 : f32 to vector<2x128xf32>
    %79 = arith.mulf %78, %5 : vector<2x128xf32>
    %80 = arith.addf %76, %79 : vector<2x128xf32>
    %c11 = arith.constant 11 : index
    %81 = memref.load %arg2[%c11] : memref<12xf32, #tpu.memory_space<smem>>
    %82 = vector.broadcast %81 : f32 to vector<2x128xf32>
    %83 = arith.mulf %82, %7 : vector<2x128xf32>
    %84 = arith.addf %80, %83 : vector<2x128xf32>
    %85 = arith.negf %84 : vector<2x128xf32>
    %86 = math.exp %85 : vector<2x128xf32>
    %cst_31 = arith.constant 1.000000e+00 : f32
    %87 = vector.broadcast %cst_31 : f32 to vector<2x128xf32>
    %88 = arith.addf %87, %86 : vector<2x128xf32>
    %89 = arith.divf %87, %88 : vector<2x128xf32>
    %c2_32 = arith.constant 2 : index
    %c0_33 = arith.constant 0 : index
    %90 = vector.load %arg6[%c2_32, %c0_33] : memref<3x128xf32, #tpu.memory_space<vmem>>, vector<1x128xf32>
    %cst_34 = arith.constant dense<0.000000e+00> : vector<128xf32>
    %91 = vector.multi_reduction <add>, %89, %cst_34 [0] : vector<2x128xf32> to vector<128xf32>
    %92 = vector.shape_cast %91 : vector<128xf32> to vector<1x128xf32>
    %93 = arith.addf %90, %92 : vector<1x128xf32>
    %c2_35 = arith.constant 2 : index
    %c0_36 = arith.constant 0 : index
    %94 = vector.load %arg6[%c2_35, %c0_36] : memref<3x128xf32, #tpu.memory_space<vmem>>, vector<1x128xf32>
    tpu.vector_store %arg6[%c2_35, %c0_36], %93 {strides = array<i32>} : memref<3x128xf32, #tpu.memory_space<vmem>>, vector<1x128xf32>,
    %c0_i32_37 = arith.constant 0 : i32
    %95 = arith.cmpi eq, %arg1, %c0_i32_37 : i32
    %96 = arith.extui %95 : i1 to i32
    %c0_i32_38 = arith.constant 0 : i32
    %97 = arith.cmpi ne, %96, %c0_i32_38 : i32
    scf.if %97 {
      %c0_39 = arith.constant 0 : index
      %c0_40 = arith.constant 0 : index
      %98 = vector.load %arg6[%c0_39, %c0_40] : memref<3x128xf32, #tpu.memory_space<vmem>>, vector<3x128xf32>
      %cst_41 = arith.constant dense<0.000000e+00> : vector<3xf32>
      %99 = vector.multi_reduction <add>, %98, %cst_41 [1] : vector<3x128xf32> to vector<3xf32>
      %100 = vector.shape_cast %99 : vector<3xf32> to vector<3x1xf32>
      %c0_42 = arith.constant 0 : index
      %c0_43 = arith.constant 0 : index
      %c0_44 = arith.constant 0 : index
      %101 = vector.load %arg5[%c0_42, %c0_43, %c0_44] : memref<1x3x1xf32, #tpu.memory_space<vmem>>, vector<1x3x1xf32>
      %102 = vector.shape_cast %101 : vector<1x3x1xf32> to vector<3x1xf32>
      %103 = vector.shape_cast %100 : vector<3x1xf32> to vector<1x3x1xf32>
      tpu.vector_store %arg5[%c0_42, %c0_43, %c0_44], %103 {strides = array<i32>} : memref<1x3x1xf32, #tpu.memory_space<vmem>>, vector<1x3x1xf32>,
    } else {
    }
    return
  }
  func.func @transform_0(%arg0: i32, %arg1: i32) -> i32 {
    %c0_i32 = arith.constant 0 : i32
    %c0_i32_0 = arith.constant 0 : i32
    return %c0_i32 : i32
  }
  func.func @transform_1(%arg0: i32, %arg1: i32) -> i32 {
    %c0_i32 = arith.constant 0 : i32
    %c0_i32_0 = arith.constant 0 : i32
    return %c0_i32 : i32
  }
  func.func @transform_2(%arg0: i32, %arg1: i32) -> (i32, i32, i32, i32) {
    %c0_i32 = arith.constant 0 : i32
    %c0_i32_0 = arith.constant 0 : i32
    %c0_i32_1 = arith.constant 0 : i32
    return %arg0, %c0_i32, %arg1, %c0_i32_0 : i32, i32, i32, i32
  }
  func.func @transform_3(%arg0: i32, %arg1: i32) -> (i32, i32, i32) {
    %c0_i32 = arith.constant 0 : i32
    %c0_i32_0 = arith.constant 0 : i32
    %c0_i32_1 = arith.constant 0 : i32
    return %arg0, %c0_i32, %c0_i32_0 : i32, i32, i32
  }
}

</mosaic_0001>

<llo_original>
// kernel: tpu_custom_call.1
$region0: #{tpu_custom_call.1}
  #allocation0 [shape = 'u32[]', space=smem, size = 0x4, offset = 0x4, fixed_abs, tag = 'smem constant byte address 0x4 - core index']
  #allocation1 [shape = 'u32[144,128]{1,0:T(1,128)}', space=vmem, size = 0x12000, scoped, tag = 'internal scratch']
  #allocation2 [shape = 'f32[3,128]{1,0:T(4,128)}', space=vmem, size = 0x800, scoped, tag = 'scratch operand']
  %s0 = inlined_call_operand.hbm [shape: f32[12], index: 0, kind: input, shape index: {}]
  %s1 = inlined_call_operand.vmem [shape: f32[3], index: 1, kind: input, shape index: {}]
  %s2 = inlined_call_operand.hbm [shape: f32[2,4,2,128], index: 2, kind: input, shape index: {}]
  %s3 = inlined_call_operand.vmem [shape: f32[2,3,1], index: 3, kind: output, shape index: {}]
  %s4 = sld [smem:[#allocation0]]
  $region65: #{tpu_custom_call.1} parent=0
    _
  %s6 = ssub.s32 1, %s4
  %s7 = scalar_select 0, %s6, %s4
  $region1: #{tpu_custom_call.1} parent=0
    #allocation3 [shape = 'u8[512]{0}', space=smem, size = 0x200, scoped, tag = 'input window, operand 0, single buffered']
    #allocation4 [shape = 's32[2]{0}', space=sflag, size = 0x8, scoped, tag = 'scoped memory for tpu_custom_call.1']
    #allocation5 [shape = 's32[2]{0}', space=sflag, size = 0x8, scoped, tag = 'scoped memory for tpu_custom_call.1']
    #allocation6 [shape = 's32[2]{0}', space=sflag, size = 0x8, scoped, tag = 'scoped memory for tpu_custom_call.1']
    #allocation7 [shape = 'u8[512]{0}', space=smem, size = 0x200, scoped, tag = 'input window, operand 1, single buffered']
    #allocation8 [shape = 'u8[8192]{0}', space=vmem, size = 0x2000, scoped, tag = 'input window, operand 2']
    %8 = vsyncpa [#allocation5], 0
    %9 = vsyncpa [#allocation6], 0
    %10 = vsyncpa [#allocation4], 0
    %s11 = scalar_lea.sflag [#allocation4], 1
    %12 = vsyncpa %s11, 0
    loop: start=0, step=1, limit=4
    $region2: #{tpu_custom_call.1} parent=1 // loop_pre_header
      _
    $region3: #{tpu_custom_call.1} parent=1 // loop_header
      %s14 = sphi 0, %s18
      %p15 = scmp.ge.s32.totalorder %s14, 4
      %s21 = sphi 0, %s33
      %s22 = sphi 0, %s29
      %s23 = sphi 0, %s21
      %s24 = sphi 0, %s22
      %s25 = sphi 0, %s23
      %s26 = sphi 0, %s24
      %s34 = sphi 0, %s34
      %s36 = sphi 0, %s34
      %s37 = sphi 0, %s36
      %s51 = sphi 0, %s37
      %s55 = sphi 0, %s55
      %s57 = sphi 0, %s55
      %s58 = sphi 0, %s57
      %s72 = sphi 0, %s58
      %s80 = sphi 0, %s82
      %s83 = sphi 0, %s80
      %s84 = sphi 0, %s83
      %s100 = sphi 0, %s84
      %s106 = sphi 0, %s108
      %s109 = sphi 0, %s106
      %s110 = sphi 0, %s109
      %s126 = sphi 0, %s110
    $region4: #{tpu_custom_call.1} parent=1 // loop_header_branch
      %17 = sbr.rel (%p15) target = $region8
    $region5: #{tpu_custom_call.1} parent=1 // loop_body
      %s19 = ssub.s32 %s14, 1
      %s20 = ssub.s32 %s14, 2
      %s27 = sadd.s32 1, %s22
      %p28 = scmp.ge.s32.totalorder %s27, 1
      %s29 = scalar_select %p28, 0, %s27
      %s30 = sadd.s32 1, %s21
      %s31 = scalar_select %p28, %s30, %s21
      %p32 = scmp.ge.s32.totalorder %s31, 2
      %s33 = scalar_select %p32, 0, %s31
      %s35 = sadd.s32 %s34, 1
      %p38 = scmp.eq.s32.totalorder %s14, 1
      %p39 = scmp.ne.s32.totalorder %s34, %s36
      %p40 = scmp.eq.s32.totalorder %s14, 0
      %p41 = por %p39, %p40
      %p42 = scmp.ne.s32.totalorder %s34, %s36
      %p43 = scmp.eq.s32.totalorder %s19, 1
      %p44 = por %p42, %p43
      %p45 = scmp.ne.s32.totalorder %s36, %s37
      %p46 = scmp.eq.s32.totalorder %s19, 0
      %p47 = por %p45, %p46
      %p48 = scmp.ne.s32.totalorder %s36, %s37
      %p49 = scmp.eq.s32.totalorder %s20, 1
      %p50 = por %p48, %p49
      %p52 = scmp.ne.s32.totalorder %s37, %s51
      %p53 = scmp.eq.s32.totalorder %s20, 0
      %p54 = por %p52, %p53
      %s56 = sadd.s32 %s55, 1
      %p59 = scmp.eq.s32.totalorder %s14, 1
      %p60 = scmp.ne.s32.totalorder %s55, %s57
      %p61 = scmp.eq.s32.totalorder %s14, 0
      %p62 = por %p60, %p61
      %p63 = scmp.ne.s32.totalorder %s55, %s57
      %p64 = scmp.eq.s32.totalorder %s19, 1
      %p65 = por %p63, %p64
      %p66 = scmp.ne.s32.totalorder %s57, %s58
      %p67 = scmp.eq.s32.totalorder %s19, 0
      %p68 = por %p66, %p67
      %p69 = scmp.ne.s32.totalorder %s57, %s58
      %p70 = scmp.eq.s32.totalorder %s20, 1
      %p71 = por %p69, %p70
      %p73 = scmp.ne.s32.totalorder %s58, %s72
      %p74 = scmp.eq.s32.totalorder %s20, 0
      %p75 = por %p73, %p74
      %s76 = ssub.s32 %s21, %s33
      %s77 = ssub.s32 %s22, %s29
      %s78 = sor.u32 %s76, %s77
      %p79 = scmp.eq.s32.totalorder %s78, 0
      %s81 = sadd.s32 %s80, 1
      %s82 = scalar_select %p79, %s80, %s81
      %p85 = pneg %p79
      %p86 = scmp.eq.s32.totalorder %s14, 1
      %p87 = por %p85, %p86
      %p88 = scmp.ne.s32.totalorder %s80, %s83
      %p89 = scmp.eq.s32.totalorder %s14, 0
      %p90 = por %p88, %p89
      %p91 = scmp.ne.s32.totalorder %s80, %s83
      %p92 = scmp.eq.s32.totalorder %s19, 1
      %p93 = por %p91, %p92
      %p94 = scmp.ne.s32.totalorder %s83, %s84
      %p95 = scmp.eq.s32.totalorder %s19, 0
      %p96 = por %p94, %p95
      %p97 = scmp.ne.s32.totalorder %s83, %s84
      %p98 = scmp.eq.s32.totalorder %s20, 1
      %p99 = por %p97, %p98
      %p101 = scmp.ne.s32.totalorder %s84, %s100
      %p102 = scmp.eq.s32.totalorder %s20, 0
      %p103 = por %p101, %p102
      %s104 = ssub.s32 %s21, %s33
      %p105 = scmp.eq.s32.totalorder %s104, 0
      %s107 = sadd.s32 %s106, 1
      %s108 = scalar_select %p105, %s106, %s107
      %p111 = pneg %p105
      %p112 = scmp.eq.s32.totalorder %s14, 1
      %p113 = por %p111, %p112
      %p114 = scmp.ne.s32.totalorder %s106, %s109
      %p115 = scmp.eq.s32.totalorder %s14, 0
      %p116 = por %p114, %p115
      %p117 = scmp.ne.s32.totalorder %s106, %s109
      %p118 = scmp.eq.s32.totalorder %s19, 1
      %p119 = por %p117, %p118
      %p120 = scmp.ne.s32.totalorder %s109, %s110
      %p121 = scmp.eq.s32.totalorder %s19, 0
      %p122 = por %p120, %p121
      %p123 = scmp.ne.s32.totalorder %s109, %s110
      %p124 = scmp.eq.s32.totalorder %s20, 1
      %p125 = por %p123, %p124
      %p127 = scmp.ne.s32.totalorder %s110, %s126
      %p128 = scmp.eq.s32.totalorder %s20, 0
      %p129 = por %p127, %p128
      %p130 = scmp.le.s32.totalorder 1, %s14
      %p131 = scmp.lt.s32.totalorder %s14, 3
      %p132 = pnand %p130, %p131
      %p133 = pneg %p132
      // Predicated region
      $region9: #{tpu_custom_call.1} parent=5 // pred_check
        _
      $region10: #{tpu_custom_call.1} parent=5 // pred_check_branch
        %135 = sbr.rel (%p132) target = $region12
      $region11: #{tpu_custom_call.1} parent=5 // pred_region
        %s136 = ssub.s32 %s14, 1
        // Predicated region
        $region13: #{tpu_custom_call.1} parent=11 // pred_check
          %p137 = pneg %p47
        $region14: #{tpu_custom_call.1} parent=11 // pred_check_branch
          %139 = sbr.rel (%p137) target = $region16
        $region15: #{tpu_custom_call.1} parent=11 // pred_region
          %s141 = ssub.s32 16, 16
          %142 = vsyncadd [#allocation5], %s141
          %145 = dma.hbm_to_smem %s0, 16, [#allocation3], [#allocation5]
        $region16: #{tpu_custom_call.1} parent=11 // pred_fallthru
          _
        // Predicated region
        $region17: #{tpu_custom_call.1} parent=11 // pred_check
          %p146 = pneg %p68
        $region18: #{tpu_custom_call.1} parent=11 // pred_check_branch
          %148 = sbr.rel (%p146) target = $region20
        $region19: #{tpu_custom_call.1} parent=11 // pred_region
          %s150 = ssub.s32 16, 16
          %151 = vsyncadd [#allocation6], %s150
          %s153 = sshll.u32 %s1, 4
          %s154 = int_to_ptr.vmem [resolvable:$true] %s153
          %156 = dma.vmem_to_smem %s154, 16, [#allocation7], [#allocation6]
        $region20: #{tpu_custom_call.1} parent=11 // pred_fallthru
          _
      $region12: #{tpu_custom_call.1} parent=5 // pred_fallthru
        _
      %p157 = scmp.lt.s32.totalorder %s14, 2
      // Predicated region
      $region21: #{tpu_custom_call.1} parent=5 // pred_check
        %p158 = pneg %p157
      $region22: #{tpu_custom_call.1} parent=5 // pred_check_branch
        %160 = sbr.rel (%p158) target = $region24
      $region23: #{tpu_custom_call.1} parent=5 // pred_region
        // Predicated region
        $region25: #{tpu_custom_call.1} parent=23 // pred_check
          %p161 = pneg %p90
        $region26: #{tpu_custom_call.1} parent=23 // pred_check_branch
          %163 = sbr.rel (%p161) target = $region28
        $region27: #{tpu_custom_call.1} parent=23 // pred_region
          %s164 = sand.u32 %s80, 1
          %s165 = scalar_lea.sflag [#allocation4], %s164
          %s166 = sand.u32 %s80, 1
          %s167 = smul.addr %s166, 8
          %s168 = scalar_lea.vmem [#allocation8], %s167
          %s170 = ssub.s32 128, 128
          %171 = vsyncadd %s165, %s170
          %s172 = smul.addr %s21, 4
          %s173 = sadd.s32 %s22, %s172
          %s174 = smul.addr %s173, 32
          %s175 = scalar_lea.hbm %s2, %s174
          %s176 = sshll.u32 %s168, 4
          %s177 = int_to_ptr.vmem [resolvable:$true] %s176
          %182 = dma.hbm_to_vmem [thread:$0]  %s175, 128, %s177, %s165, 32, 32, 2
        $region28: #{tpu_custom_call.1} parent=23 // pred_fallthru
          _
      $region24: #{tpu_custom_call.1} parent=5 // pred_fallthru
        _
      %p183 = scmp.le.s32.totalorder 1, %s14
      %p184 = scmp.lt.s32.totalorder %s14, 3
      %p185 = pnand %p183, %p184
      %p186 = pneg %p185
      // Predicated region
      $region29: #{tpu_custom_call.1} parent=5 // pred_check
        _
      $region30: #{tpu_custom_call.1} parent=5 // pred_check_branch
        %188 = sbr.rel (%p185) target = $region32
      $region31: #{tpu_custom_call.1} parent=5 // pred_region
        %s189 = ssub.s32 %s14, 1
        // Predicated region
        $region33: #{tpu_custom_call.1} parent=31 // pred_check
          %p190 = pneg %p47
        $region34: #{tpu_custom_call.1} parent=31 // pred_check_branch
          %192 = sbr.rel (%p190) target = $region36
        $region35: #{tpu_custom_call.1} parent=31 // pred_region
          %193 = dma.done [#allocation5], 16
        $region36: #{tpu_custom_call.1} parent=31 // pred_fallthru
          _
        // Predicated region
        $region37: #{tpu_custom_call.1} parent=31 // pred_check
          %p194 = pneg %p68
        $region38: #{tpu_custom_call.1} parent=31 // pred_check_branch
          %196 = sbr.rel (%p194) target = $region40
        $region39: #{tpu_custom_call.1} parent=31 // pred_region
          %197 = dma.done [#allocation6], 16
        $region40: #{tpu_custom_call.1} parent=31 // pred_fallthru
          _
        %s198 = sand.u32 %s83, 1
        %s199 = scalar_lea.sflag [#allocation4], %s198
        %s200 = sand.u32 %s83, 1
        %s201 = smul.addr %s200, 8
        %s202 = scalar_lea.vmem [#allocation8], %s201
        // Predicated region
        $region41: #{tpu_custom_call.1} parent=31 // pred_check
          %p203 = pneg %p96
        $region42: #{tpu_custom_call.1} parent=31 // pred_check_branch
          %205 = sbr.rel (%p203) target = $region44
        $region43: #{tpu_custom_call.1} parent=31 // pred_region
          %206 = dma.done %s199, 128
        $region44: #{tpu_custom_call.1} parent=31 // pred_fallthru
          _
        %207 = sfence
        %p208 = pneg %p47
        %p209 = pneg %p44
        %p210 = pneg %p68
        %p211 = pneg %p65
        %s212 = sand.u32 %s83, 1
        %s213 = scalar_lea.sflag [#allocation4], %s212
        %s214 = sand.u32 %s83, 1
        %s215 = smul.addr %s214, 8
        %s216 = scalar_lea.vmem [#allocation8], %s215
        %p217 = pneg %p96
        %p218 = pneg %p93
        %p219 = pneg %p122
        %p220 = pneg %p119
        %p221 = scmp.lt.s32.totalorder %s23, 1
        %s222 = scalar_select %p221, %s23, 1
        %s223 = smul.addr %s222, 4
        %s224 = scalar_lea.vmem %s3, %s223
        %p225 = scmp.lt.s32.totalorder %s23, 1
        %s226 = scalar_select %p225, %s23, 1
        %s227 = smul.addr %s226, 4
        %s228 = scalar_lea.vmem %s3, %s227
        %v229 = vld [vmem:[%s202] sm:$0x3]
        %s230 = scalar_lea.vmem %s202, 2 [#allocation8]
        %v231 = vld [vmem:[%s230] sm:$0x3]
        %s232 = scalar_lea.vmem %s202, 4 [#allocation8]
        %v233 = vld [vmem:[%s232] sm:$0x3]
        %s234 = scalar_lea.vmem %s202, 6 [#allocation8]
        %v235 = vld [vmem:[%s234] sm:$0x3]
        %p236 = scmp.eq.s32.totalorder %s24, 0
        // Predicated region
        $region45: #{tpu_custom_call.1} parent=31 // pred_check
          %p237 = pneg %p236
        $region46: #{tpu_custom_call.1} parent=31 // pred_check_branch
          %239 = sbr.rel (%p237) target = $region48
        $region47: #{tpu_custom_call.1} parent=31 // pred_region
          %240 = vst [vmem:[#allocation2] sm:$0x7] 0.0
        $region48: #{tpu_custom_call.1} parent=31 // pred_fallthru
          _
        %s241 = sld [smem:[#allocation7]]
        %s242 = sld [smem:[#allocation3]]
        %v243 = vstv %s242
        %v244 = vmul.f32 %v243, %v229
        %v245 = vstv %s241
        %v246 = vadd.f32 %v245, %v244
        %s247 = sld [smem:[#allocation3 + $0x1]]
        %v248 = vstv %s247
        %v249 = vmul.f32 %v248, %v231
        %v250 = vadd.f32 %v246, %v249
        %s251 = sld [smem:[#allocation3 + $0x2]]
        %v252 = vstv %s251
        %v253 = vmul.f32 %v252, %v233
        %v254 = vadd.f32 %v250, %v253
        %s255 = sld [smem:[#allocation3 + $0x3]]
        %v256 = vstv %s255
        %v257 = vmul.f32 %v256, %v235
        %v258 = vadd.f32 %v254, %v257
        %v259 = vxor.u32 %v258, 2147483648
        %v260 = vmul.f32 %v259, 1.442695
        %v261 = vpow.pop %v260
        %v262 = vadd.f32 %v261, 1.0
        %v263 = vrcp.pop %v262
        %v264 = vmul.f32 1.0, %v263
        %v265 = vld [vmem:[#allocation2] sm:$0x1]
        %vm266 = vcmask 1041408
        %v267 = vsel %vm266, %v264, 0.0
        %v268 = vrot.slane %v267, 4
        %v269 = vadd.f32 %v267, %v268
        %v270 = vrot.slane %v269, 2
        %v271 = vadd.f32 %v269, %v270
        %v272 = vrot.slane %v271, 1
        %v273 = vadd.f32 %v271, %v272
        %v274 = vadd.f32 %v265, %v273
        %275 = vst [vmem:[#allocation2] sm:$0x1] %v274
        %s276 = sld [smem:[#allocation7 + $0x1]]
        %s277 = sld [smem:[#allocation3 + $0x4]]
        %v278 = vstv %s277
        %v279 = vmul.f32 %v278, %v229
        %v280 = vstv %s276
        %v281 = vadd.f32 %v280, %v279
        %s282 = sld [smem:[#allocation3 + $0x5]]
        %v283 = vstv %s282
        %v284 = vmul.f32 %v283, %v231
        %v285 = vadd.f32 %v281, %v284
        %s286 = sld [smem:[#allocation3 + $0x6]]
        %v287 = vstv %s286
        %v288 = vmul.f32 %v287, %v233
        %v289 = vadd.f32 %v285, %v288
        %s290 = sld [smem:[#allocation3 + $0x7]]
        %v291 = vstv %s290
        %v292 = vmul.f32 %v291, %v235
        %v293 = vadd.f32 %v289, %v292
        %v294 = vxor.u32 %v293, 2147483648
        %v295 = vmul.f32 %v294, 1.442695
        %v296 = vpow.pop %v295
        %v297 = vadd.f32 %v296, 1.0
        %v298 = vrcp.pop %v297
        %v299 = vmul.f32 1.0, %v298
        %v300 = vld [vmem:[#allocation2 + $0x1] sm:$0x1]
        %v301 = vsel %vm266, %v299, 0.0
        %v302 = vrot.slane %v301, 4
        %v303 = vadd.f32 %v301, %v302
        %v304 = vrot.slane %v303, 2
        %v305 = vadd.f32 %v303, %v304
        %v306 = vrot.slane %v305, 1
        %v307 = vadd.f32 %v305, %v306
        %v308 = vadd.f32 %v300, %v307
        %309 = vst [vmem:[#allocation2 + $0x1] sm:$0x1] %v308
        %s310 = sld [smem:[#allocation7 + $0x2]]
        %s311 = sld [smem:[#allocation3 + $0x8]]
        %v312 = vstv %s311
        %v313 = vmul.f32 %v312, %v229
        %v314 = vstv %s310
        %v315 = vadd.f32 %v314, %v313
        %s316 = sld [smem:[#allocation3 + $0x9]]
        %v317 = vstv %s316
        %v318 = vmul.f32 %v317, %v231
        %v319 = vadd.f32 %v315, %v318
        %s320 = sld [smem:[#allocation3 + $0xa]]
        %v321 = vstv %s320
        %v322 = vmul.f32 %v321, %v233
        %v323 = vadd.f32 %v319, %v322
        %s324 = sld [smem:[#allocation3 + $0xb]]
        %v325 = vstv %s324
        %v326 = vmul.f32 %v325, %v235
        %v327 = vadd.f32 %v323, %v326
        %v328 = vxor.u32 %v327, 2147483648
        %v329 = vmul.f32 %v328, 1.442695
        %v330 = vpow.pop %v329
        %v331 = vadd.f32 %v330, 1.0
        %v332 = vrcp.pop %v331
        %v333 = vmul.f32 1.0, %v332
        %v334 = vld [vmem:[#allocation2 + $0x2] sm:$0x1]
        %v335 = vsel %vm266, %v333, 0.0
        %v336 = vrot.slane %v335, 4
        %v337 = vadd.f32 %v335, %v336
        %v338 = vrot.slane %v337, 2
        %v339 = vadd.f32 %v337, %v338
        %v340 = vrot.slane %v339, 1
        %v341 = vadd.f32 %v339, %v340
        %v342 = vadd.f32 %v334, %v341
        %343 = vst [vmem:[#allocation2 + $0x2] sm:$0x1] %v342
        // Predicated region
        $region49: #{tpu_custom_call.1} parent=31 // pred_check
          %p344 = pneg %p236
        $region50: #{tpu_custom_call.1} parent=31 // pred_check_branch
          %346 = sbr.rel (%p344) target = $region52
        $region51: #{tpu_custom_call.1} parent=31 // pred_region
          %v347 = vld [vmem:[#allocation2] sm:$0x7]
          %vm348 = vcmask 1042432
          %v349 = vsel %vm348, %v347, 0.0
          %350 = vadd.xlane.f32.xlu0 %v349
          %v351 = vpop.xlane.xlu0 %350
          %vm352 = vcmask 2048
          %353 = vst.msk [vmem:[%s228] sm:$0x7] %vm352, %v351
        $region52: #{tpu_custom_call.1} parent=31 // pred_fallthru
          _
        %p354 = scmp.lt.s32.totalorder %s23, 1
        %s355 = scalar_select %p354, %s23, 1
        %s356 = smul.addr %s355, 4
        %s357 = scalar_lea.vmem %s3, %s356
        // Predicated region
        $region53: #{tpu_custom_call.1} parent=31 // pred_check
          %p358 = pneg %p119
        $region54: #{tpu_custom_call.1} parent=31 // pred_check_branch
          %360 = sbr.rel (%p358) target = $region56
        $region55: #{tpu_custom_call.1} parent=31 // pred_region
          _
        $region56: #{tpu_custom_call.1} parent=31 // pred_fallthru
          _
      $region32: #{tpu_custom_call.1} parent=5 // pred_fallthru
        _
      %p361 = scmp.le.s32.totalorder 2, %s14
      // Predicated region
      $region57: #{tpu_custom_call.1} parent=5 // pred_check
        %p362 = pneg %p361
      $region58: #{tpu_custom_call.1} parent=5 // pred_check_branch
        %364 = sbr.rel (%p362) target = $region60
      $region59: #{tpu_custom_call.1} parent=5 // pred_region
        %s365 = ssub.s32 %s14, 2
        // Predicated region
        $region61: #{tpu_custom_call.1} parent=59 // pred_check
          %p366 = pneg %p125
        $region62: #{tpu_custom_call.1} parent=59 // pred_check_branch
          %368 = sbr.rel (%p366) target = $region64
        $region63: #{tpu_custom_call.1} parent=59 // pred_region
          %p369 = scmp.lt.s32.totalorder %s25, 1
          %s370 = scalar_select %p369, %s25, 1
          %s371 = smul.addr %s370, 4
          %s372 = scalar_lea.vmem %s3, %s371
        $region64: #{tpu_custom_call.1} parent=59 // pred_fallthru
          _
      $region60: #{tpu_custom_call.1} parent=5 // pred_fallthru
        _
    $region6: #{tpu_custom_call.1} parent=1 // loop_footer
      %s18 = sadd.s32 1, %s14
    $region7: #{tpu_custom_call.1} parent=1 // loop_footer_branch
      %13 = sbr.rel target = $region3
    $region8: #{tpu_custom_call.1} parent=1 // loop_exit
      _
    %373 = vsyncpa [#allocation4], 1
    %s374 = scalar_lea.sflag [#allocation4], 1
    %375 = vsyncpa %s374, 1
    %376 = vsyncpa [#allocation5], 1
    %s377 = scalar_lea.sflag [#allocation5], 1
    %378 = vsyncpa %s377, 1
    %379 = vsyncpa [#allocation6], 1
    %s380 = scalar_lea.sflag [#allocation6], 1
    %381 = vsyncpa %s380, 1

</llo_original>
